<compile_context>
chip_gen: v7x
topology: tpu7x:2x2x1
jax: 0.10.0
libtpu: 0.0.40
codegen_flags: <defaults>
</compile_context>

<pallas_src>
import functools

import jax
import jax.numpy as jnp
from jax.experimental import pallas as pl
from jax.experimental.pallas import tpu as pltpu


# ---------------------------------------------------------------------------
# Kernel 1: per-node feature transform   X -> (X @ W_self + b,  X @ W_neigh)
# ---------------------------------------------------------------------------
def _transform_kernel(x_ref, ws_ref, wn_ref, b_ref, self_ref, neigh_ref):
    x = x_ref[...]                                   # (tile_m, f_in) bf16
    self_ref[...] = (jnp.dot(x, ws_ref[...], preferred_element_type=jnp.float32)
                     + b_ref[...]).astype(self_ref.dtype)          # f32 epilogue
    neigh_ref[...] = jnp.dot(x, wn_ref[...],
                             preferred_element_type=jnp.float32
                             ).astype(neigh_ref.dtype)             # stored bf16


def node_transform(x_bf16, w_self_bf16, w_neigh_bf16, bias_f32, *, tile_m=128):
    n, f_in = x_bf16.shape
    f_out = w_self_bf16.shape[1]
    assert n % tile_m == 0
    return pl.pallas_call(
        _transform_kernel,
        grid=(n // tile_m,),
        in_specs=[
            pl.BlockSpec((tile_m, f_in), lambda i: (i, 0)),   # X tile (streamed once)
            pl.BlockSpec((f_in, f_out), lambda i: (0, 0)),    # W_self (resident)
            pl.BlockSpec((f_in, f_out), lambda i: (0, 0)),    # W_neigh (resident)
            pl.BlockSpec((1, f_out), lambda i: (0, 0)),       # bias (resident)
        ],
        out_specs=(
            pl.BlockSpec((tile_m, f_out), lambda i: (i, 0)),
            pl.BlockSpec((tile_m, f_out), lambda i: (i, 0)),
        ),
        out_shape=(
            jax.ShapeDtypeStruct((n, f_out), jnp.float32),    # XW_self + b
            jax.ShapeDtypeStruct((n, f_out), jnp.bfloat16),   # XW_neigh (bf16 MXU input)
        ),
        compiler_params=pltpu.CompilerParams(dimension_semantics=("parallel",)),
    )(x_bf16, w_self_bf16, w_neigh_bf16, bias_f32)


# ---------------------------------------------------------------------------
# Kernel 2: mean-neighbor aggregation + combine (+ optional ReLU)
#   out[i] = sum_k A[i, k] @ XW_neigh[k]  +  XW_self[i]
# ---------------------------------------------------------------------------
def _aggregate_kernel(a_ref, xw_neigh_ref, xw_self_ref, o_ref, acc_ref, *, apply_relu):
    k = pl.program_id(1)

    @pl.when(k == 0)
    def _():
        acc_ref[...] = jnp.zeros_like(acc_ref)

    acc_ref[...] += jnp.dot(a_ref[...], xw_neigh_ref[...],
                            preferred_element_type=jnp.float32)     # bf16 x bf16 -> f32

    @pl.when(k == pl.num_programs(1) - 1)
    def _():
        out = acc_ref[...] + xw_self_ref[...]                       # f32 epilogue
        if apply_relu:
            out = jnp.maximum(out, 0.0)
        o_ref[...] = out.astype(o_ref.dtype)


def aggregate_combine(a_norm_bf16, xw_neigh_bf16, xw_self_f32, *, apply_relu,
                      tile_m=128, tile_k=128):
    n = a_norm_bf16.shape[0]
    f_out = xw_neigh_bf16.shape[1]
    assert n % tile_m == 0 and n % tile_k == 0
    kernel = functools.partial(_aggregate_kernel, apply_relu=apply_relu)
    return pl.pallas_call(
        kernel,
        grid=(n // tile_m, n // tile_k),                 # reduction (src) axis last
        in_specs=[
            pl.BlockSpec((tile_m, tile_k), lambda i, k: (i, k)),   # A_norm tile (bf16)
            pl.BlockSpec((tile_k, f_out), lambda i, k: (k, 0)),    # XW_neigh k-slice (bf16)
            pl.BlockSpec((tile_m, f_out), lambda i, k: (i, 0)),    # XW_self row tile (f32)
        ],
        out_specs=pl.BlockSpec((tile_m, f_out), lambda i, k: (i, 0)),
        out_shape=jax.ShapeDtypeStruct((n, f_out), jnp.float32),
        scratch_shapes=[pltpu.VMEM((tile_m, f_out), jnp.float32)],  # f32 accumulator
        compiler_params=pltpu.CompilerParams(
            dimension_semantics=("parallel", "arbitrary")),
    )(a_norm_bf16, xw_neigh_bf16, xw_self_f32)


# ---------------------------------------------------------------------------
# SAGEConv layer + GraphSAGE forward
# ---------------------------------------------------------------------------
def sage_layer(a_norm_bf16, x, w_self, w_neigh, bias, *, apply_relu,
               tile_m=128, tile_k=128):
    xw_self, xw_neigh = node_transform(
        x.astype(jnp.bfloat16),
        w_self.astype(jnp.bfloat16),
        w_neigh.astype(jnp.bfloat16),
        bias,
        tile_m=tile_m)
    return aggregate_combine(a_norm_bf16, xw_neigh, xw_self,
                             apply_relu=apply_relu, tile_m=tile_m, tile_k=tile_k)


def graphsage_forward(a_norm, in_feat, params, *, tile_m=128, tile_k=128):
    """GraphSAGE.forward: conv1 -> ReLU -> conv2."""
    a_bf16 = a_norm.astype(jnp.bfloat16)     # bf16 A halves the O(N^2) HBM stream
    h = sage_layer(a_bf16, in_feat,
                   params["w_self1"], params["w_neigh1"], params["b1"],
                   apply_relu=True, tile_m=tile_m, tile_k=tile_k)
    h = sage_layer(a_bf16, h,
                   params["w_self2"], params["w_neigh2"], params["b2"],
                   apply_relu=False, tile_m=tile_m, tile_k=tile_k)
    return h


# ---------------------------------------------------------------------------
# Params / reference / demo
# ---------------------------------------------------------------------------
def init_params(key, in_feats, h_feats):
    ks = jax.random.split(key, 4)

    def glorot(k, fan_in, fan_out):
        lim = (6.0 / (fan_in + fan_out)) ** 0.5
        return jax.random.uniform(k, (fan_in, fan_out), jnp.float32, -lim, lim)

    return {
        "w_self1": glorot(ks[0], in_feats, h_feats),
        "w_neigh1": glorot(ks[1], in_feats, h_feats),
        "b1": jnp.zeros((1, h_feats), jnp.float32),
        "w_self2": glorot(ks[2], h_feats, h_feats),
        "w_neigh2": glorot(ks[3], h_feats, h_feats),
        "b2": jnp.zeros((1, h_feats), jnp.float32),
    }


def graphsage_reference(a_norm, in_feat, params):
    """Pure-JAX reference with the same bf16 casting policy as the kernels."""
    a_bf16 = a_norm.astype(jnp.bfloat16)

    def layer(x, ws, wn, b, relu):
        xb = x.astype(jnp.bfloat16)
        xw_self = jnp.dot(xb, ws.astype(jnp.bfloat16),
                          preferred_element_type=jnp.float32) + b
        xw_neigh = jnp.dot(xb, wn.astype(jnp.bfloat16),
                           preferred_element_type=jnp.float32).astype(jnp.bfloat16)
        out = xw_self + jnp.dot(a_bf16, xw_neigh, preferred_element_type=jnp.float32)
        return jnp.maximum(out, 0.0) if relu else out

    h = layer(in_feat, params["w_self1"], params["w_neigh1"], params["b1"], True)
    return layer(h, params["w_self2"], params["w_neigh2"], params["b2"], False)


if __name__ == "__main__":
    # Small synthetic graph standing in for Cora; dims kept at multiples of 128
    # so all tiles are lane-dense and the k-reduction axis is actually exercised.
    N = 256
    IN_FEATS = 128
    H_FEATS = 128
    TILE_M = 128
    TILE_K = 128

    key = jax.random.PRNGKey(0)
    k_adj, k_feat, k_param = jax.random.split(key, 3)

    # Dense adjacency [dst, src], ~10% edge density; row-normalize for mean aggregation.
    adj = jax.random.bernoulli(k_adj, 0.1, (N, N)).astype(jnp.float32)
    in_deg = jnp.sum(adj, axis=1, keepdims=True)
    a_norm = adj / jnp.maximum(in_deg, 1.0)      # zero rows for isolated nodes

    in_feat = jax.random.normal(k_feat, (N, IN_FEATS), jnp.float32)
    params = init_params(k_param, IN_FEATS, H_FEATS)

    out = graphsage_forward(a_norm, in_feat, params, tile_m=TILE_M, tile_k=TILE_K)
    out = jax.block_until_ready(out)

    assert out.shape == (N, H_FEATS) and out.dtype == jnp.float32
    assert bool(jnp.all(jnp.isfinite(out)))

    ref = graphsage_reference(a_norm, in_feat, params)
    max_err = float(jnp.max(jnp.abs(out - ref)))
    assert max_err < 5e-2, f"mismatch vs reference: max |err| = {max_err}"

    print("KERNEL_OK")
</pallas_src>

<mosaic_0001>
module attributes {stable_mosaic.version = 11 : i64} {
  func.func @_transform_kernel(%arg0: i32, %arg1: memref<128x128xbf16, #tpu.memory_space<vmem>>, %arg2: memref<128x128xbf16, #tpu.memory_space<vmem>>, %arg3: memref<128x128xbf16, #tpu.memory_space<vmem>>, %arg4: memref<1x128xf32, #tpu.memory_space<vmem>>, %arg5: memref<128x128xf32, #tpu.memory_space<vmem>>, %arg6: memref<128x128xbf16, #tpu.memory_space<vmem>>) attributes {dimension_semantics = [#tpu.dimension_semantics<parallel>], iteration_bounds = array<i64: 2>, scalar_prefetch = 0 : i64, scratch_operands = 0 : i64, tpu.core_type = #tpu.core_type<tc>, window_params = [{transform_indices = @transform_0, window_bounds = array<i64: 128, 128>}, {pipeline_mode = #tpu.pipeline_mode<synchronous>, transform_indices = @transform_1, window_bounds = array<i64: 128, 128>}, {pipeline_mode = #tpu.pipeline_mode<synchronous>, transform_indices = @transform_2, window_bounds = array<i64: 128, 128>}, {pipeline_mode = #tpu.pipeline_mode<synchronous>, transform_indices = @transform_3, window_bounds = array<i64: 1, 128>}, {transform_indices = @transform_4, window_bounds = array<i64: 128, 128>}, {transform_indices = @transform_5, window_bounds = array<i64: 128, 128>}]} {
    %c0 = arith.constant 0 : index
    %c0_0 = arith.constant 0 : index
    %0 = vector.load %arg1[%c0, %c0_0] : memref<128x128xbf16, #tpu.memory_space<vmem>>, vector<128x128xbf16>
    %c0_1 = arith.constant 0 : index
    %c0_2 = arith.constant 0 : index
    %1 = vector.load %arg2[%c0_1, %c0_2] : memref<128x128xbf16, #tpu.memory_space<vmem>>, vector<128x128xbf16>
    %cst = arith.constant dense<0.000000e+00> : vector<128x128xf32>
    %2 = tpu.matmul %0, %1, %cst {dimension_numbers = #tpu.dot_dimension_numbers<[1], [0], [0], [1], [0, 0, 1, 1], [], []>} : vector<128x128xbf16>, vector<128x128xbf16>, vector<128x128xf32> -> vector<128x128xf32>
    %c0_3 = arith.constant 0 : index
    %c0_4 = arith.constant 0 : index
    %3 = vector.load %arg4[%c0_3, %c0_4] : memref<1x128xf32, #tpu.memory_space<vmem>>, vector<1x128xf32>
    %4 = vector.broadcast %3 : vector<1x128xf32> to vector<128x128xf32>
    %5 = arith.addf %2, %4 : vector<128x128xf32>
    %c0_5 = arith.constant 0 : index
    %c0_6 = arith.constant 0 : index
    %6 = vector.load %arg5[%c0_5, %c0_6] : memref<128x128xf32, #tpu.memory_space<vmem>>, vector<128x128xf32>
    tpu.vector_store %arg5[%c0_5, %c0_6], %5 {strides = array<i32>} : memref<128x128xf32, #tpu.memory_space<vmem>>, vector<128x128xf32>,
    %c0_7 = arith.constant 0 : index
    %c0_8 = arith.constant 0 : index
    %7 = vector.load %arg3[%c0_7, %c0_8] : memref<128x128xbf16, #tpu.memory_space<vmem>>, vector<128x128xbf16>
    %cst_9 = arith.constant dense<0.000000e+00> : vector<128x128xf32>
    %8 = tpu.matmul %0, %7, %cst_9 {dimension_numbers = #tpu.dot_dimension_numbers<[1], [0], [0], [1], [0, 0, 1, 1], [], []>} : vector<128x128xbf16>, vector<128x128xbf16>, vector<128x128xf32> -> vector<128x128xf32>
    %9 = arith.truncf %8 : vector<128x128xf32> to vector<128x128xbf16>
    %c0_10 = arith.constant 0 : index
    %c0_11 = arith.constant 0 : index
    %10 = vector.load %arg6[%c0_10, %c0_11] : memref<128x128xbf16, #tpu.memory_space<vmem>>, vector<128x128xbf16>
    tpu.vector_store %arg6[%c0_10, %c0_11], %9 {strides = array<i32>} : memref<128x128xbf16, #tpu.memory_space<vmem>>, vector<128x128xbf16>,
    return
  }
  func.func @transform_0(%arg0: i32) -> (i32, i32) {
    %c0_i32 = arith.constant 0 : i32
    %c0_i32_0 = arith.constant 0 : i32
    return %arg0, %c0_i32 : i32, i32
  }
  func.func @transform_1(%arg0: i32) -> (i32, i32) {
    %c0_i32 = arith.constant 0 : i32
    %c0_i32_0 = arith.constant 0 : i32
    %c0_i32_1 = arith.constant 0 : i32
    return %c0_i32, %c0_i32_0 : i32, i32
  }
  func.func @transform_2(%arg0: i32) -> (i32, i32) {
    %c0_i32 = arith.constant 0 : i32
    %c0_i32_0 = arith.constant 0 : i32
    %c0_i32_1 = arith.constant 0 : i32
    return %c0_i32, %c0_i32_0 : i32, i32
  }
  func.func @transform_3(%arg0: i32) -> (i32, i32) {
    %c0_i32 = arith.constant 0 : i32
    %c0_i32_0 = arith.constant 0 : i32
    %c0_i32_1 = arith.constant 0 : i32
    return %c0_i32, %c0_i32_0 : i32, i32
  }
  func.func @transform_4(%arg0: i32) -> (i32, i32) {
    %c0_i32 = arith.constant 0 : i32
    %c0_i32_0 = arith.constant 0 : i32
    return %arg0, %c0_i32 : i32, i32
  }
  func.func @transform_5(%arg0: i32) -> (i32, i32) {
    %c0_i32 = arith.constant 0 : i32
    %c0_i32_0 = arith.constant 0 : i32
    return %arg0, %c0_i32 : i32, i32
  }
}

</mosaic_0001>

<llo_original>
// kernel: tpu_custom_call.1
$region0: #{tpu_custom_call.1}
  #allocation0 [shape = 'u32[]', space=smem, size = 0x4, offset = 0x4, fixed_abs, tag = 'smem constant byte address 0x4 - core index']
  #allocation1 [shape = 'u32[144,128]{1,0:T(1,128)}', space=vmem, size = 0x12000, scoped, tag = 'internal scratch']
  %s0 = inlined_call_operand.hbm [shape: bf16[256,128], index: 0, kind: input, shape index: {}]
  %s1 = inlined_call_operand.hbm [shape: bf16[128,128], index: 1, kind: input, shape index: {}]
  %s2 = inlined_call_operand.hbm [shape: bf16[128,128], index: 2, kind: input, shape index: {}]
  %s3 = inlined_call_operand.vmem [shape: f32[1,128], index: 3, kind: input, shape index: {}]
  %s4 = inlined_call_operand.hbm [shape: f32[256,128], index: 4, kind: output, shape index: {0}]
  %s5 = inlined_call_operand.hbm [shape: bf16[256,128], index: 5, kind: output, shape index: {1}]
  %6 = xla_tuple %s4, %s5
  %s7 = sld [smem:[#allocation0]]
  $region69: #{tpu_custom_call.1} parent=0
    _
  %s9 = ssub.s32 1, %s7
  %s10 = scalar_select 0, %s9, %s7
  $region1: #{tpu_custom_call.1} parent=0
    #allocation2 [shape = 'u8[65536]{0}', space=vmem, size = 0x10000, scoped, tag = 'input window, operand 0']
    #allocation3 [shape = 's32[2]{0}', space=sflag, size = 0x8, scoped, tag = 'scoped memory for tpu_custom_call.1']
    #allocation4 [shape = 's32[2]{0}', space=sflag, size = 0x8, scoped, tag = 'scoped memory for tpu_custom_call.1']
    #allocation5 [shape = 'u8[32768]{0}', space=vmem, size = 0x8000, scoped, tag = 'input window, operand 1, single buffered']
    #allocation6 [shape = 's32[1]{0}', space=sflag, size = 0x4, scoped, tag = 'scoped memory for tpu_custom_call.1']
    #allocation7 [shape = 'u8[32768]{0}', space=vmem, size = 0x8000, scoped, tag = 'input window, operand 2, single buffered']
    #allocation8 [shape = 'u8[131072]{0}', space=vmem, size = 0x20000, scoped, tag = 'output window, operand 0']
    #allocation9 [shape = 'u8[65536]{0}', space=vmem, size = 0x10000, scoped, tag = 'output window, operand 1']
    #allocation10 [shape = 's32[2]{0}', space=sflag, size = 0x8, scoped, tag = 'scoped memory for tpu_custom_call.1']
    %11 = vsyncpa [#allocation3], 0
    %s12 = scalar_lea.sflag [#allocation3], 1
    %13 = vsyncpa %s12, 0
    %14 = vsyncpa [#allocation6], 0
    %15 = vsyncpa [#allocation4], 0
    %s16 = scalar_lea.sflag [#allocation4], 1
    %17 = vsyncpa %s16, 0
    %18 = vsyncpa [#allocation10], 0
    %s19 = scalar_lea.sflag [#allocation10], 1
    %20 = vsyncpa %s19, 0
    loop: start=0, step=1, limit=4
    $region2: #{tpu_custom_call.1} parent=1 // loop_pre_header
      _
    $region3: #{tpu_custom_call.1} parent=1 // loop_header
      %s22 = sphi 0, %s26
      %p23 = scmp.ge.s32.totalorder %s22, 4
      %s32 = sphi 0, %s34
      %s35 = sphi 0, %s32
      %s36 = sphi 0, %s35
      %s52 = sphi 0, %s36
      %s56 = sphi 0, %s56
      %s58 = sphi 0, %s56
      %s59 = sphi 0, %s58
      %s73 = sphi 0, %s59
      %s77 = sphi 0, %s77
      %s79 = sphi 0, %s77
      %s80 = sphi 0, %s79
      %s94 = sphi 0, %s80
      %s98 = sphi 0, %s98
      %s100 = sphi 0, %s98
      %s101 = sphi 0, %s100
      %s115 = sphi 0, %s101
      %s121 = sphi 0, %s123
      %s124 = sphi 0, %s121
      %s125 = sphi 0, %s124
      %s141 = sphi 0, %s125
      %s147 = sphi 0, %s149
      %s150 = sphi 0, %s147
      %s151 = sphi 0, %s150
      %s167 = sphi 0, %s151
    $region4: #{tpu_custom_call.1} parent=1 // loop_header_branch
      %25 = sbr.rel (%p23) target = $region8
    $region5: #{tpu_custom_call.1} parent=1 // loop_body
      %s27 = ssub.s32 %s22, 1
      %s28 = ssub.s32 %s22, 2
      %s29 = sadd.s32 %s22, 1
      %s30 = ssub.s32 %s22, %s29
      %p31 = scmp.eq.s32.totalorder %s30, 0
      %s33 = sadd.s32 %s32, 1
      %s34 = scalar_select %p31, %s32, %s33
      %p37 = pneg %p31
      %p38 = scmp.eq.s32.totalorder %s22, 1
      %p39 = por %p37, %p38
      %p40 = scmp.ne.s32.totalorder %s32, %s35
      %p41 = scmp.eq.s32.totalorder %s22, 0
      %p42 = por %p40, %p41
      %p43 = scmp.ne.s32.totalorder %s32, %s35
      %p44 = scmp.eq.s32.totalorder %s27, 1
      %p45 = por %p43, %p44
      %p46 = scmp.ne.s32.totalorder %s35, %s36
      %p47 = scmp.eq.s32.totalorder %s27, 0
      %p48 = por %p46, %p47
      %p49 = scmp.ne.s32.totalorder %s35, %s36
      %p50 = scmp.eq.s32.totalorder %s28, 1
      %p51 = por %p49, %p50
      %p53 = scmp.ne.s32.totalorder %s36, %s52
      %p54 = scmp.eq.s32.totalorder %s28, 0
      %p55 = por %p53, %p54
      %s57 = sadd.s32 %s56, 1
      %p60 = scmp.eq.s32.totalorder %s22, 1
      %p61 = scmp.ne.s32.totalorder %s56, %s58
      %p62 = scmp.eq.s32.totalorder %s22, 0
      %p63 = por %p61, %p62
      %p64 = scmp.ne.s32.totalorder %s56, %s58
      %p65 = scmp.eq.s32.totalorder %s27, 1
      %p66 = por %p64, %p65
      %p67 = scmp.ne.s32.totalorder %s58, %s59
      %p68 = scmp.eq.s32.totalorder %s27, 0
      %p69 = por %p67, %p68
      %p70 = scmp.ne.s32.totalorder %s58, %s59
      %p71 = scmp.eq.s32.totalorder %s28, 1
      %p72 = por %p70, %p71
      %p74 = scmp.ne.s32.totalorder %s59, %s73
      %p75 = scmp.eq.s32.totalorder %s28, 0
      %p76 = por %p74, %p75
      %s78 = sadd.s32 %s77, 1
      %p81 = scmp.eq.s32.totalorder %s22, 1
      %p82 = scmp.ne.s32.totalorder %s77, %s79
      %p83 = scmp.eq.s32.totalorder %s22, 0
      %p84 = por %p82, %p83
      %p85 = scmp.ne.s32.totalorder %s77, %s79
      %p86 = scmp.eq.s32.totalorder %s27, 1
      %p87 = por %p85, %p86
      %p88 = scmp.ne.s32.totalorder %s79, %s80
      %p89 = scmp.eq.s32.totalorder %s27, 0
      %p90 = por %p88, %p89
      %p91 = scmp.ne.s32.totalorder %s79, %s80
      %p92 = scmp.eq.s32.totalorder %s28, 1
      %p93 = por %p91, %p92
      %p95 = scmp.ne.s32.totalorder %s80, %s94
      %p96 = scmp.eq.s32.totalorder %s28, 0
      %p97 = por %p95, %p96
      %s99 = sadd.s32 %s98, 1
      %p102 = scmp.eq.s32.totalorder %s22, 1
      %p103 = scmp.ne.s32.totalorder %s98, %s100
      %p104 = scmp.eq.s32.totalorder %s22, 0
      %p105 = por %p103, %p104
      %p106 = scmp.ne.s32.totalorder %s98, %s100
      %p107 = scmp.eq.s32.totalorder %s27, 1
      %p108 = por %p106, %p107
      %p109 = scmp.ne.s32.totalorder %s100, %s101
      %p110 = scmp.eq.s32.totalorder %s27, 0
      %p111 = por %p109, %p110
      %p112 = scmp.ne.s32.totalorder %s100, %s101
      %p113 = scmp.eq.s32.totalorder %s28, 1
      %p114 = por %p112, %p113
      %p116 = scmp.ne.s32.totalorder %s101, %s115
      %p117 = scmp.eq.s32.totalorder %s28, 0
      %p118 = por %p116, %p117
      %s119 = ssub.s32 %s22, %s29
      %p120 = scmp.eq.s32.totalorder %s119, 0
      %s122 = sadd.s32 %s121, 1
      %s123 = scalar_select %p120, %s121, %s122
      %p126 = pneg %p120
      %p127 = scmp.eq.s32.totalorder %s22, 1
      %p128 = por %p126, %p127
      %p129 = scmp.ne.s32.totalorder %s121, %s124
      %p130 = scmp.eq.s32.totalorder %s22, 0
      %p131 = por %p129, %p130
      %p132 = scmp.ne.s32.totalorder %s121, %s124
      %p133 = scmp.eq.s32.totalorder %s27, 1
      %p134 = por %p132, %p133
      %p135 = scmp.ne.s32.totalorder %s124, %s125
      %p136 = scmp.eq.s32.totalorder %s27, 0
      %p137 = por %p135, %p136
      %p138 = scmp.ne.s32.totalorder %s124, %s125
      %p139 = scmp.eq.s32.totalorder %s28, 1
      %p140 = por %p138, %p139
      %p142 = scmp.ne.s32.totalorder %s125, %s141
      %p143 = scmp.eq.s32.totalorder %s28, 0
      %p144 = por %p142, %p143
      %s145 = ssub.s32 %s22, %s29
      %p146 = scmp.eq.s32.totalorder %s145, 0
      %s148 = sadd.s32 %s147, 1
      %s149 = scalar_select %p146, %s147, %s148
      %p152 = pneg %p146
      %p153 = scmp.eq.s32.totalorder %s22, 1
      %p154 = por %p152, %p153
      %p155 = scmp.ne.s32.totalorder %s147, %s150
      %p156 = scmp.eq.s32.totalorder %s22, 0
      %p157 = por %p155, %p156
      %p158 = scmp.ne.s32.totalorder %s147, %s150
      %p159 = scmp.eq.s32.totalorder %s27, 1
      %p160 = por %p158, %p159
      %p161 = scmp.ne.s32.totalorder %s150, %s151
      %p162 = scmp.eq.s32.totalorder %s27, 0
      %p163 = por %p161, %p162
      %p164 = scmp.ne.s32.totalorder %s150, %s151
      %p165 = scmp.eq.s32.totalorder %s28, 1
      %p166 = por %p164, %p165
      %p168 = scmp.ne.s32.totalorder %s151, %s167
      %p169 = scmp.eq.s32.totalorder %s28, 0
      %p170 = por %p168, %p169
      %p171 = scmp.le.s32.totalorder 1, %s22
      %p172 = scmp.lt.s32.totalorder %s22, 3
      %p173 = pnand %p171, %p172
      %p174 = pneg %p173
      // Predicated region
      $region9: #{tpu_custom_call.1} parent=5 // pred_check
        _
      $region10: #{tpu_custom_call.1} parent=5 // pred_check_branch
        %176 = sbr.rel (%p173) target = $region12
      $region11: #{tpu_custom_call.1} parent=5 // pred_region
        %s177 = ssub.s32 %s22, 1
        // Predicated region
        $region13: #{tpu_custom_call.1} parent=11 // pred_check
          %p178 = pneg %p69
        $region14: #{tpu_custom_call.1} parent=11 // pred_check_branch
          %180 = sbr.rel (%p178) target = $region16
        $region15: #{tpu_custom_call.1} parent=11 // pred_region
          %s182 = ssub.s32 1024, 1024
          %183 = vsyncadd [#allocation6], %s182
          %s184 = sshll.u32 [#allocation5], 4
          %s185 = int_to_ptr.vmem [resolvable:$true] %s184
          %190 = dma.hbm_to_vmem [thread:$0]  %s1, 1024, %s185, [#allocation6], 64, 64, 4
        $region16: #{tpu_custom_call.1} parent=11 // pred_fallthru
          _
        // Predicated region
        $region17: #{tpu_custom_call.1} parent=11 // pred_check
          %p191 = pneg %p90
        $region18: #{tpu_custom_call.1} parent=11 // pred_check_branch
          %193 = sbr.rel (%p191) target = $region20
        $region19: #{tpu_custom_call.1} parent=11 // pred_region
          %s195 = ssub.s32 1024, 1024
          %196 = vsyncadd [#allocation6], %s195
          %s197 = sshll.u32 [#allocation7], 4
          %s198 = int_to_ptr.vmem [resolvable:$true] %s197
          %203 = dma.hbm_to_vmem [thread:$0]  %s2, 1024, %s198, [#allocation6], 64, 64, 4
        $region20: #{tpu_custom_call.1} parent=11 // pred_fallthru
          _
        // Predicated region
        $region21: #{tpu_custom_call.1} parent=11 // pred_check
          %p204 = pneg %p111
        $region22: #{tpu_custom_call.1} parent=11 // pred_check_branch
          %206 = sbr.rel (%p204) target = $region24
        $region23: #{tpu_custom_call.1} parent=11 // pred_region
          _
        $region24: #{tpu_custom_call.1} parent=11 // pred_fallthru
          _
      $region12: #{tpu_custom_call.1} parent=5 // pred_fallthru
        _
      %p207 = scmp.lt.s32.totalorder %s22, 2
      // Predicated region
      $region25: #{tpu_custom_call.1} parent=5 // pred_check
        %p208 = pneg %p207
      $region26: #{tpu_custom_call.1} parent=5 // pred_check_branch
        %210 = sbr.rel (%p208) target = $region28
      $region27: #{tpu_custom_call.1} parent=5 // pred_region
        // Predicated region
        $region29: #{tpu_custom_call.1} parent=27 // pred_check
          %p211 = pneg %p42
        $region30: #{tpu_custom_call.1} parent=27 // pred_check_branch
          %213 = sbr.rel (%p211) target = $region32
        $region31: #{tpu_custom_call.1} parent=27 // pred_region
          %s214 = sand.u32 %s32, 1
          %s215 = scalar_lea.sflag [#allocation3], %s214
          %s216 = sand.u32 %s32, 1
          %s217 = smul.addr %s216, 64
          %s218 = scalar_lea.vmem [#allocation2], %s217
          %s219 = smul.u32 16, %s22
          %s221 = ssub.s32 1024, 1024
          %222 = vsyncadd %s215, %s221
          %s223 = smul.addr %s219, 64
          %s224 = scalar_lea.hbm %s0, %s223
          %s225 = sshll.u32 %s218, 4
          %s226 = int_to_ptr.vmem [resolvable:$true] %s225
          %231 = dma.hbm_to_vmem [thread:$0]  %s224, 1024, %s226, %s215, 64, 64, 4
        $region32: #{tpu_custom_call.1} parent=27 // pred_fallthru
          _
      $region28: #{tpu_custom_call.1} parent=5 // pred_fallthru
        _
      %p232 = scmp.le.s32.totalorder 1, %s22
      %p233 = scmp.lt.s32.totalorder %s22, 3
      %p234 = pnand %p232, %p233
      %p235 = pneg %p234
      // Predicated region
      $region33: #{tpu_custom_call.1} parent=5 // pred_check
        _
      $region34: #{tpu_custom_call.1} parent=5 // pred_check_branch
        %237 = sbr.rel (%p234) target = $region36
      $region35: #{tpu_custom_call.1} parent=5 // pred_region
        %s238 = ssub.s32 %s22, 1
        %s239 = sand.u32 %s35, 1
        %s240 = scalar_lea.sflag [#allocation3], %s239
        %s241 = sand.u32 %s35, 1
        %s242 = smul.addr %s241, 64
        %s243 = scalar_lea.vmem [#allocation2], %s242
        // Predicated region
        $region37: #{tpu_custom_call.1} parent=35 // pred_check
          %p244 = pneg %p48
        $region38: #{tpu_custom_call.1} parent=35 // pred_check_branch
          %246 = sbr.rel (%p244) target = $region40
        $region39: #{tpu_custom_call.1} parent=35 // pred_region
          %247 = dma.done %s240, 1024
        $region40: #{tpu_custom_call.1} parent=35 // pred_fallthru
          _
        // Predicated region
        $region41: #{tpu_custom_call.1} parent=35 // pred_check
          %p248 = pneg %p69
        $region42: #{tpu_custom_call.1} parent=35 // pred_check_branch
          %250 = sbr.rel (%p248) target = $region44
        $region43: #{tpu_custom_call.1} parent=35 // pred_region
          %251 = dma.done [#allocation6], 1024
        $region44: #{tpu_custom_call.1} parent=35 // pred_fallthru
          _
        // Predicated region
        $region45: #{tpu_custom_call.1} parent=35 // pred_check
          %p252 = pneg %p90
        $region46: #{tpu_custom_call.1} parent=35 // pred_check_branch
          %254 = sbr.rel (%p252) target = $region48
        $region47: #{tpu_custom_call.1} parent=35 // pred_region
          %255 = dma.done [#allocation6], 1024
        $region48: #{tpu_custom_call.1} parent=35 // pred_fallthru
          _
        %s256 = sand.u32 %s35, 1
        %s257 = scalar_lea.sflag [#allocation3], %s256
        %s258 = sand.u32 %s35, 1
        %s259 = smul.addr %s258, 64
        %s260 = scalar_lea.vmem [#allocation2], %s259
        %p261 = pneg %p48
        %p262 = pneg %p45
        %p263 = pneg %p69
        %p264 = pneg %p66
        %p265 = pneg %p90
        %p266 = pneg %p87
        %p267 = pneg %p111
        %p268 = pneg %p108
        %p269 = pneg %p137
        %p270 = pneg %p134
        %s271 = sand.u32 %s124, 1
        %s272 = scalar_lea.sflag [#allocation4], %s271
        %s273 = sand.u32 %s124, 1
        %s274 = smul.addr %s273, 128
        %s275 = scalar_lea.vmem [#allocation8], %s274
        %p276 = pneg %p163
        %p277 = pneg %p160
        %s278 = sand.u32 %s150, 1
        %s279 = scalar_lea.sflag [#allocation10], %s278
        %s280 = sand.u32 %s150, 1
        %s281 = smul.addr %s280, 64
        %s282 = scalar_lea.vmem [#allocation9], %s281
        %s283 = smul.u32 16, %s27
        %s284 = smul.u32 16, %s27
        %s285 = smul.u32 16, %s27
        %v287 = vld [vmem:[%s243] sm:$0xf]
        %v288 = vld [vmem:[%s243 + $0x4] sm:$0xf]
        %v289 = vld [vmem:[%s243 + $0x8] sm:$0xf]
        %v290 = vld [vmem:[%s243 + $0xc] sm:$0xf]
        %v291 = vld [vmem:[%s243 + $0x10] sm:$0xf]
        %v292 = vld [vmem:[%s243 + $0x14] sm:$0xf]
        %v293 = vld [vmem:[%s243 + $0x18] sm:$0xf]
        %v294 = vld [vmem:[%s243 + $0x1c] sm:$0xf]
        %v295 = vld [vmem:[%s243 + $0x20] sm:$0xf]
        %v296 = vld [vmem:[%s243 + $0x24] sm:$0xf]
        %v297 = vld [vmem:[%s243 + $0x28] sm:$0xf]
        %v298 = vld [vmem:[%s243 + $0x2c] sm:$0xf]
        %v299 = vld [vmem:[%s243 + $0x30] sm:$0xf]
        %v300 = vld [vmem:[%s243 + $0x34] sm:$0xf]
        %v301 = vld [vmem:[%s243 + $0x38] sm:$0xf]
        %v302 = vld [vmem:[%s243 + $0x3c] sm:$0xf]
        %v303 = vld [vmem:[#allocation5] sm:$0xf]
        %v304 = vld [vmem:[#allocation5 + $0x4] sm:$0xf]
        %v305 = vld [vmem:[#allocation5 + $0x8] sm:$0xf]
        %v306 = vld [vmem:[#allocation5 + $0xc] sm:$0xf]
        %v307 = vld [vmem:[#allocation5 + $0x10] sm:$0xf]
        %v308 = vld [vmem:[#allocation5 + $0x14] sm:$0xf]
        %v309 = vld [vmem:[#allocation5 + $0x18] sm:$0xf]
        %v310 = vld [vmem:[#allocation5 + $0x1c] sm:$0xf]
        %v311 = vld [vmem:[#allocation5 + $0x20] sm:$0xf]
        %v312 = vld [vmem:[#allocation5 + $0x24] sm:$0xf]
        %v313 = vld [vmem:[#allocation5 + $0x28] sm:$0xf]
        %v314 = vld [vmem:[#allocation5 + $0x2c] sm:$0xf]
        %v315 = vld [vmem:[#allocation5 + $0x30] sm:$0xf]
        %v316 = vld [vmem:[#allocation5 + $0x34] sm:$0xf]
        %v317 = vld [vmem:[#allocation5 + $0x38] sm:$0xf]
        %v318 = vld [vmem:[#allocation5 + $0x3c] sm:$0xf]
        %v319 = vld [vmem:[%s3] sm:$0x1]
        %v321 = vlaneseq
        %v322 = vshrl.u32 %v321, 7
        %v323 = vsub.s32 0, %v322
        %v324 = vrot.slane %v319, %v323
        %v342 = vunpack.c.l.b16 %v287
        %v343 = vunpack.c.l.b16 %v288
        %v344 = vunpack.c.l.b16 %v289
        %v345 = vunpack.c.l.b16 %v290
        %v346 = vunpack.c.l.b16 %v291
        %v347 = vunpack.c.l.b16 %v292
        %v348 = vunpack.c.l.b16 %v293
        %v349 = vunpack.c.l.b16 %v294
        %v350 = vunpack.c.l.b16 %v295
        %v351 = vunpack.c.l.b16 %v296
        %v352 = vunpack.c.l.b16 %v297
        %v353 = vunpack.c.l.b16 %v298
        %v354 = vunpack.c.l.b16 %v299
        %v355 = vunpack.c.l.b16 %v300
        %v356 = vunpack.c.l.b16 %v301
        %v357 = vunpack.c.l.b16 %v302
        %v358 = vpack.c.b16 %v343, %v342
        %v359 = vpack.c.b16 %v345, %v344
        %v360 = vpack.c.b16 %v347, %v346
        %v361 = vpack.c.b16 %v349, %v348
        %v362 = vpack.c.b16 %v351, %v350
        %v363 = vpack.c.b16 %v353, %v352
        %v364 = vpack.c.b16 %v355, %v354
        %v365 = vpack.c.b16 %v357, %v356
        %v390 = vunpack.c.l.b16 %v303
        %v391 = vunpack.c.l.b16 %v304
        %v392 = vunpack.c.l.b16 %v305
        %v393 = vunpack.c.l.b16 %v306
        %v394 = vunpack.c.l.b16 %v307
        %v395 = vunpack.c.l.b16 %v308
        %v396 = vunpack.c.l.b16 %v309
        %v397 = vunpack.c.l.b16 %v310
        %v398 = vunpack.c.l.b16 %v311
        %v399 = vunpack.c.l.b16 %v312
        %v400 = vunpack.c.l.b16 %v313
        %v401 = vunpack.c.l.b16 %v314
        %v402 = vunpack.c.l.b16 %v315
        %v403 = vunpack.c.l.b16 %v316
        %v404 = vunpack.c.l.b16 %v317
        %v405 = vunpack.c.l.b16 %v318
        %v406 = vpack.c.b16 %v391, %v390
        %v407 = vpack.c.b16 %v393, %v392
        %v408 = vpack.c.b16 %v395, %v394
        %v409 = vpack.c.b16 %v397, %v396
        %v410 = vpack.c.b16 %v399, %v398
        %v411 = vpack.c.b16 %v401, %v400
        %v412 = vpack.c.b16 %v403, %v402
        %v413 = vpack.c.b16 %v405, %v404
        %422 = vmatprep.subr.bf16.mxu0 0
        %423 = vmatpush1.bf16.msra.mxu0 %v406
        %424 = vmatprep.subr.bf16.mxu0 0
        %425 = vmatpush1.bf16.msra.mxu0 %v407
        %426 = vmatprep.subr.bf16.mxu0 0
        %427 = vmatpush1.bf16.msra.mxu0 %v408
        %428 = vmatprep.subr.bf16.mxu0 0
        %429 = vmatpush1.bf16.msra.mxu0 %v409
        %430 = vmatprep.subr.bf16.mxu0 0
        %431 = vmatpush1.bf16.msra.mxu0 %v410
        %432 = vmatprep.subr.bf16.mxu0 0
        %433 = vmatpush1.bf16.msra.mxu0 %v411
        %434 = vmatprep.subr.bf16.mxu0 0
        %435 = vmatpush1.bf16.msra.mxu0 %v412
        %436 = vmatprep.subr.bf16.mxu0 0
        %437 = vmatpush1.bf16.msra.mxu0 %v413
        %438 = vmatprep.subr.bf16.mxu0 0
        %439 = vmatpush1.bf16.msra.mxu0 0
        %440 = vmatprep.subr.bf16.mxu0 0
        %441 = vmatpush1.bf16.msra.mxu0 0
        %442 = vmatprep.subr.bf16.mxu0 0
        %443 = vmatpush1.bf16.msra.mxu0 0
        %444 = vmatprep.subr.bf16.mxu0 0
        %445 = vmatpush1.bf16.msra.mxu0 0
        %446 = vmatprep.subr.bf16.mxu0 0
        %447 = vmatpush1.bf16.msra.mxu0 0
        %448 = vmatprep.subr.bf16.mxu0 0
        %449 = vmatpush1.bf16.msra.mxu0 0
        %450 = vmatprep.subr.bf16.mxu0 0
        %451 = vmatpush1.bf16.msra.mxu0 0
        %452 = vmatprep.subr.bf16.mxu0 0
        %453 = vmatpush1.bf16.msra.mxu0 0
        %454 = vmatprep.mubr.bf16.mxu0 0
        %455 = vmatmul.mubr.bf16.gmra.mrb[0].mxu0 %v358
        %v456 = vpop.f32.mrb[0].mxu0
        %v457 = vadd.f32 %v324, %v456
        %v458 = vpop.f32.mrb[0].mxu0
        %v459 = vpop.f32.mrb[0].mxu0
        %v460 = vadd.f32 %v324, %v459
        %v461 = vpop.f32.mrb[0].mxu0
        %462 = vmatprep.mubr.bf16.mxu0 0
        %463 = vmatmul.mubr.bf16.gmra.mrb[0].mxu0 %v359
        %v464 = vpop.f32.mrb[0].mxu0
        %v465 = vadd.f32 %v324, %v464
        %v466 = vpop.f32.mrb[0].mxu0
        %v467 = vpop.f32.mrb[0].mxu0
        %v468 = vadd.f32 %v324, %v467
        %v469 = vpop.f32.mrb[0].mxu0
        %470 = vmatprep.mubr.bf16.mxu0 0
        %471 = vmatmul.mubr.bf16.gmra.mrb[0].mxu0 %v360
        %v472 = vpop.f32.mrb[0].mxu0
        %v473 = vadd.f32 %v324, %v472
        %v474 = vpop.f32.mrb[0].mxu0
        %v475 = vpop.f32.mrb[0].mxu0
        %v476 = vadd.f32 %v324, %v475
        %v477 = vpop.f32.mrb[0].mxu0
        %478 = vmatprep.mubr.bf16.mxu0 0
        %479 = vmatmul.mubr.bf16.gmra.mrb[0].mxu0 %v361
        %v480 = vpop.f32.mrb[0].mxu0
        %v481 = vadd.f32 %v324, %v480
        %v482 = vpop.f32.mrb[0].mxu0
        %v483 = vpop.f32.mrb[0].mxu0
        %v484 = vadd.f32 %v324, %v483
        %v485 = vpop.f32.mrb[0].mxu0
        %486 = vmatprep.mubr.bf16.mxu0 0
        %487 = vmatmul.mubr.bf16.gmra.mrb[0].mxu0 %v362
        %v488 = vpop.f32.mrb[0].mxu0
        %v489 = vadd.f32 %v324, %v488
        %v490 = vpop.f32.mrb[0].mxu0
        %v491 = vpop.f32.mrb[0].mxu0
        %v492 = vadd.f32 %v324, %v491
        %v493 = vpop.f32.mrb[0].mxu0
        %494 = vmatprep.mubr.bf16.mxu0 0
        %495 = vmatmul.mubr.bf16.gmra.mrb[0].mxu0 %v363
        %v496 = vpop.f32.mrb[0].mxu0
        %v497 = vadd.f32 %v324, %v496
        %v498 = vpop.f32.mrb[0].mxu0
        %v499 = vpop.f32.mrb[0].mxu0
        %v500 = vadd.f32 %v324, %v499
        %v501 = vpop.f32.mrb[0].mxu0
        %502 = vmatprep.mubr.bf16.mxu0 0
        %503 = vmatmul.mubr.bf16.gmra.mrb[0].mxu0 %v364
        %v504 = vpop.f32.mrb[0].mxu0
        %v505 = vadd.f32 %v324, %v504
        %v506 = vpop.f32.mrb[0].mxu0
        %v507 = vpop.f32.mrb[0].mxu0
        %v508 = vadd.f32 %v324, %v507
        %v509 = vpop.f32.mrb[0].mxu0
        %510 = vmatprep.mubr.bf16.mxu0 0
        %511 = vmatmul.mubr.bf16.gmra.mrb[0].mxu0 %v365
        %v512 = vpop.f32.mrb[0].mxu0
        %v513 = vadd.f32 %v324, %v512
        %v514 = vpop.f32.mrb[0].mxu0
        %v515 = vpop.f32.mrb[0].mxu0
        %v516 = vadd.f32 %v324, %v515
        %v517 = vpop.f32.mrb[0].mxu0
        %518 = vdwg.mxu0
        %519 = vst [vmem:[%s275] sm:$0xff] %v457
        %520 = vst [vmem:[%s275 + $0x8] sm:$0xff] %v460
        %521 = vst [vmem:[%s275 + $0x10] sm:$0xff] %v465
        %522 = vst [vmem:[%s275 + $0x18] sm:$0xff] %v468
        %523 = vst [vmem:[%s275 + $0x20] sm:$0xff] %v473
        %524 = vst [vmem:[%s275 + $0x28] sm:$0xff] %v476
        %525 = vst [vmem:[%s275 + $0x30] sm:$0xff] %v481
        %526 = vst [vmem:[%s275 + $0x38] sm:$0xff] %v484
        %527 = vst [vmem:[%s275 + $0x40] sm:$0xff] %v489
        %528 = vst [vmem:[%s275 + $0x48] sm:$0xff] %v492
        %529 = vst [vmem:[%s275 + $0x50] sm:$0xff] %v497
        %530 = vst [vmem:[%s275 + $0x58] sm:$0xff] %v500
        %531 = vst [vmem:[%s275 + $0x60] sm:$0xff] %v505
        %532 = vst [vmem:[%s275 + $0x68] sm:$0xff] %v508
        %533 = vst [vmem:[%s275 + $0x70] sm:$0xff] %v513
        %534 = vst [vmem:[%s275 + $0x78] sm:$0xff] %v516
        %v535 = vld [vmem:[#allocation7] sm:$0xf]
        %v536 = vld [vmem:[#allocation7 + $0x4] sm:$0xf]
        %v537 = vld [vmem:[#allocation7 + $0x8] sm:$0xf]
        %v538 = vld [vmem:[#allocation7 + $0xc] sm:$0xf]
        %v539 = vld [vmem:[#allocation7 + $0x10] sm:$0xf]
        %v540 = vld [vmem:[#allocation7 + $0x14] sm:$0xf]
        %v541 = vld [vmem:[#allocation7 + $0x18] sm:$0xf]
        %v542 = vld [vmem:[#allocation7 + $0x1c] sm:$0xf]
        %v543 = vld [vmem:[#allocation7 + $0x20] sm:$0xf]
        %v544 = vld [vmem:[#allocation7 + $0x24] sm:$0xf]
        %v545 = vld [vmem:[#allocation7 + $0x28] sm:$0xf]
        %v546 = vld [vmem:[#allocation7 + $0x2c] sm:$0xf]
        %v547 = vld [vmem:[#allocation7 + $0x30] sm:$0xf]
        %v548 = vld [vmem:[#allocation7 + $0x34] sm:$0xf]
        %v549 = vld [vmem:[#allocation7 + $0x38] sm:$0xf]
        %v550 = vld [vmem:[#allocation7 + $0x3c] sm:$0xf]
        %v567 = vunpack.c.l.b16 %v535
        %v568 = vunpack.c.l.b16 %v536
        %v569 = vunpack.c.l.b16 %v537
        %v570 = vunpack.c.l.b16 %v538
        %v571 = vunpack.c.l.b16 %v539
        %v572 = vunpack.c.l.b16 %v540
        %v573 = vunpack.c.l.b16 %v541
        %v574 = vunpack.c.l.b16 %v542
        %v575 = vunpack.c.l.b16 %v543
        %v576 = vunpack.c.l.b16 %v544
        %v577 = vunpack.c.l.b16 %v545
        %v578 = vunpack.c.l.b16 %v546
        %v579 = vunpack.c.l.b16 %v547
        %v580 = vunpack.c.l.b16 %v548
        %v581 = vunpack.c.l.b16 %v549
        %v582 = vunpack.c.l.b16 %v550
        %v583 = vpack.c.b16 %v568, %v567
        %v584 = vpack.c.b16 %v570, %v569
        %v585 = vpack.c.b16 %v572, %v571
        %v586 = vpack.c.b16 %v574, %v573
        %v587 = vpack.c.b16 %v576, %v575
        %v588 = vpack.c.b16 %v578, %v577
        %v589 = vpack.c.b16 %v580, %v579
        %v590 = vpack.c.b16 %v582, %v581
        %599 = vmatprep.subr.bf16.mxu0 0
        %600 = vmatpush1.bf16.msra.mxu0 %v583
        %601 = vmatprep.subr.bf16.mxu0 0
        %602 = vmatpush1.bf16.msra.mxu0 %v584
        %603 = vmatprep.subr.bf16.mxu0 0
        %604 = vmatpush1.bf16.msra.mxu0 %v585
        %605 = vmatprep.subr.bf16.mxu0 0
        %606 = vmatpush1.bf16.msra.mxu0 %v586
        %607 = vmatprep.subr.bf16.mxu0 0
        %608 = vmatpush1.bf16.msra.mxu0 %v587
        %609 = vmatprep.subr.bf16.mxu0 0
        %610 = vmatpush1.bf16.msra.mxu0 %v588
        %611 = vmatprep.subr.bf16.mxu0 0
        %612 = vmatpush1.bf16.msra.mxu0 %v589
        %613 = vmatprep.subr.bf16.mxu0 0
        %614 = vmatpush1.bf16.msra.mxu0 %v590
        %615 = vmatprep.subr.bf16.mxu0 0
        %616 = vmatpush1.bf16.msra.mxu0 0
        %617 = vmatprep.subr.bf16.mxu0 0
        %618 = vmatpush1.bf16.msra.mxu0 0
        %619 = vmatprep.subr.bf16.mxu0 0
        %620 = vmatpush1.bf16.msra.mxu0 0
        %621 = vmatprep.subr.bf16.mxu0 0
        %622 = vmatpush1.bf16.msra.mxu0 0
        %623 = vmatprep.subr.bf16.mxu0 0
        %624 = vmatpush1.bf16.msra.mxu0 0
        %625 = vmatprep.subr.bf16.mxu0 0
        %626 = vmatpush1.bf16.msra.mxu0 0
        %627 = vmatprep.subr.bf16.mxu0 0
        %628 = vmatpush1.bf16.msra.mxu0 0
        %629 = vmatprep.subr.bf16.mxu0 0
        %630 = vmatpush1.bf16.msra.mxu0 0
        %631 = vmatprep.mubr.bf16.mxu0 0
        %632 = vmatmul.mubr.bf16.gmra.mrb[0].mxu0 %v358
        %v633 = vpop.f32.mrb[0].mxu0
        %v634 = vadd.f32 0.0, %v633
        %v635 = vpop.f32.mrb[0].mxu0
        %v636 = vpop.f32.mrb[0].mxu0
        %v637 = vadd.f32 0.0, %v636
        %v638 = vpop.f32.mrb[0].mxu0
        %639 = vmatprep.mubr.bf16.mxu0 0
        %640 = vmatmul.mubr.bf16.gmra.mrb[0].mxu0 %v359
        %v641 = vpop.f32.mrb[0].mxu0
        %v642 = vadd.f32 0.0, %v641
        %v643 = vpop.f32.mrb[0].mxu0
        %v644 = vpop.f32.mrb[0].mxu0
        %v645 = vadd.f32 0.0, %v644
        %v646 = vpop.f32.mrb[0].mxu0
        %647 = vmatprep.mubr.bf16.mxu0 0
        %648 = vmatmul.mubr.bf16.gmra.mrb[0].mxu0 %v360
        %v649 = vpop.f32.mrb[0].mxu0
        %v650 = vadd.f32 0.0, %v649
        %v651 = vpop.f32.mrb[0].mxu0
        %v652 = vpop.f32.mrb[0].mxu0
        %v653 = vadd.f32 0.0, %v652
        %v654 = vpop.f32.mrb[0].mxu0
        %655 = vmatprep.mubr.bf16.mxu0 0
        %656 = vmatmul.mubr.bf16.gmra.mrb[0].mxu0 %v361
        %v657 = vpop.f32.mrb[0].mxu0
        %v658 = vadd.f32 0.0, %v657
        %v659 = vpop.f32.mrb[0].mxu0
        %v660 = vpop.f32.mrb[0].mxu0
        %v661 = vadd.f32 0.0, %v660
        %v662 = vpop.f32.mrb[0].mxu0
        %663 = vmatprep.mubr.bf16.mxu0 0
        %664 = vmatmul.mubr.bf16.gmra.mrb[0].mxu0 %v362
        %v665 = vpop.f32.mrb[0].mxu0
        %v666 = vadd.f32 0.0, %v665
        %v667 = vpop.f32.mrb[0].mxu0
        %v668 = vpop.f32.mrb[0].mxu0
        %v669 = vadd.f32 0.0, %v668
        %v670 = vpop.f32.mrb[0].mxu0
        %671 = vmatprep.mubr.bf16.mxu0 0
        %672 = vmatmul.mubr.bf16.gmra.mrb[0].mxu0 %v363
        %v673 = vpop.f32.mrb[0].mxu0
        %v674 = vadd.f32 0.0, %v673
        %v675 = vpop.f32.mrb[0].mxu0
        %v676 = vpop.f32.mrb[0].mxu0
        %v677 = vadd.f32 0.0, %v676
        %v678 = vpop.f32.mrb[0].mxu0
        %679 = vmatprep.mubr.bf16.mxu0 0
        %680 = vmatmul.mubr.bf16.gmra.mrb[0].mxu0 %v364
        %v681 = vpop.f32.mrb[0].mxu0
        %v682 = vadd.f32 0.0, %v681
        %v683 = vpop.f32.mrb[0].mxu0
        %v684 = vpop.f32.mrb[0].mxu0
        %v685 = vadd.f32 0.0, %v684
        %v686 = vpop.f32.mrb[0].mxu0
        %687 = vmatprep.mubr.bf16.mxu0 0
        %688 = vmatmul.mubr.bf16.gmra.mrb[0].mxu0 %v365
        %v689 = vpop.f32.mrb[0].mxu0
        %v690 = vadd.f32 0.0, %v689
        %v691 = vpop.f32.mrb[0].mxu0
        %v692 = vpop.f32.mrb[0].mxu0
        %v693 = vadd.f32 0.0, %v692
        %v694 = vpop.f32.mrb[0].mxu0
        %695 = vdwg.mxu0
        %v696 = vpack.c.bf16 %v637, %v634
        %v697 = vpack.c.bf16 %v645, %v642
        %v698 = vpack.c.bf16 %v653, %v650
        %v699 = vpack.c.bf16 %v661, %v658
        %v700 = vpack.c.bf16 %v669, %v666
        %v701 = vpack.c.bf16 %v677, %v674
        %v702 = vpack.c.bf16 %v685, %v682
        %v703 = vpack.c.bf16 %v693, %v690
        %v712 = vunpack.c.l.b16 %v696
        %v713 = vunpack.c.h.b16 %v696
        %v714 = vunpack.c.l.b16 %v697
        %v715 = vunpack.c.h.b16 %v697
        %v716 = vunpack.c.l.b16 %v698
        %v717 = vunpack.c.h.b16 %v698
        %v718 = vunpack.c.l.b16 %v699
        %v719 = vunpack.c.h.b16 %v699
        %v720 = vunpack.c.l.b16 %v700
        %v721 = vunpack.c.h.b16 %v700
        %v722 = vunpack.c.l.b16 %v701
        %v723 = vunpack.c.h.b16 %v701
        %v724 = vunpack.c.l.b16 %v702
        %v725 = vunpack.c.h.b16 %v702
        %v726 = vunpack.c.l.b16 %v703
        %v727 = vunpack.c.h.b16 %v703
        %v728 = vpack.c.b16 %v712, %v712
        %v729 = vpack.c.b16 %v713, %v713
        %v730 = vpack.c.b16 %v714, %v714
        %v731 = vpack.c.b16 %v715, %v715
        %v732 = vpack.c.b16 %v716, %v716
        %v733 = vpack.c.b16 %v717, %v717
        %v734 = vpack.c.b16 %v718, %v718
        %v735 = vpack.c.b16 %v719, %v719
        %v736 = vpack.c.b16 %v720, %v720
        %v737 = vpack.c.b16 %v721, %v721
        %v738 = vpack.c.b16 %v722, %v722
        %v739 = vpack.c.b16 %v723, %v723
        %v740 = vpack.c.b16 %v724, %v724
        %v741 = vpack.c.b16 %v725, %v725
        %v742 = vpack.c.b16 %v726, %v726
        %v743 = vpack.c.b16 %v727, %v727
        %760 = vst [vmem:[%s282] sm:$0xf] %v728
        %761 = vst [vmem:[%s282 + $0x4] sm:$0xf] %v729
        %762 = vst [vmem:[%s282 + $0x8] sm:$0xf] %v730
        %763 = vst [vmem:[%s282 + $0xc] sm:$0xf] %v731
        %764 = vst [vmem:[%s282 + $0x10] sm:$0xf] %v732
        %765 = vst [vmem:[%s282 + $0x14] sm:$0xf] %v733
        %766 = vst [vmem:[%s282 + $0x18] sm:$0xf] %v734
        %767 = vst [vmem:[%s282 + $0x1c] sm:$0xf] %v735
        %768 = vst [vmem:[%s282 + $0x20] sm:$0xf] %v736
        %769 = vst [vmem:[%s282 + $0x24] sm:$0xf] %v737
        %770 = vst [vmem:[%s282 + $0x28] sm:$0xf] %v738
        %771 = vst [vmem:[%s282 + $0x2c] sm:$0xf] %v739
        %772 = vst [vmem:[%s282 + $0x30] sm:$0xf] %v740
        %773 = vst [vmem:[%s282 + $0x34] sm:$0xf] %v741
        %774 = vst [vmem:[%s282 + $0x38] sm:$0xf] %v742
        %775 = vst [vmem:[%s282 + $0x3c] sm:$0xf] %v743
        %s776 = sand.u32 %s124, 1
        %s777 = scalar_lea.sflag [#allocation4], %s776
        %s778 = sand.u32 %s124, 1
        %s779 = smul.addr %s778, 128
        %s780 = scalar_lea.vmem [#allocation8], %s779
        %s781 = sand.u32 %s150, 1
        %s782 = scalar_lea.sflag [#allocation10], %s781
        %s783 = sand.u32 %s150, 1
        %s784 = smul.addr %s783, 64
        %s785 = scalar_lea.vmem [#allocation9], %s784
        // Predicated region
        $region49: #{tpu_custom_call.1} parent=35 // pred_check
          %p786 = pneg %p134
        $region50: #{tpu_custom_call.1} parent=35 // pred_check_branch
          %788 = sbr.rel (%p786) target = $region52
        $region51: #{tpu_custom_call.1} parent=35 // pred_region
          %s789 = smul.u32 16, %s27
          %s791 = ssub.s32 2048, 2048
          %792 = vsyncadd %s777, %s791
          %s793 = smul.addr %s789, 128
          %s794 = scalar_lea.hbm %s4, %s793
          %s795 = sshll.u32 %s780, 4
          %s796 = int_to_ptr.vmem [resolvable:$true] %s795
          %801 = dma.vmem_to_hbm [thread:$0]  %s796, 2048, %s794, %s777, 128, 128, 8
        $region52: #{tpu_custom_call.1} parent=35 // pred_fallthru
          _
        // Predicated region
        $region53: #{tpu_custom_call.1} parent=35 // pred_check
          %p802 = pneg %p160
        $region54: #{tpu_custom_call.1} parent=35 // pred_check_branch
          %804 = sbr.rel (%p802) target = $region56
        $region55: #{tpu_custom_call.1} parent=35 // pred_region
          %s805 = smul.u32 16, %s27
          %s807 = ssub.s32 1024, 1024
          %808 = vsyncadd %s782, %s807
          %s809 = smul.addr %s805, 64
          %s810 = scalar_lea.hbm %s5, %s809
          %s811 = sshll.u32 %s785, 4
          %s812 = int_to_ptr.vmem [resolvable:$true] %s811
          %817 = dma.vmem_to_hbm [thread:$0]  %s812, 1024, %s810, %s782, 64, 64, 4
        $region56: #{tpu_custom_call.1} parent=35 // pred_fallthru
          _
      $region36: #{tpu_custom_call.1} parent=5 // pred_fallthru
        _
      %p818 = scmp.le.s32.totalorder 2, %s22
      // Predicated region
      $region57: #{tpu_custom_call.1} parent=5 // pred_check
        %p819 = pneg %p818
      $region58: #{tpu_custom_call.1} parent=5 // pred_check_branch
        %821 = sbr.rel (%p819) target = $region60
      $region59: #{tpu_custom_call.1} parent=5 // pred_region
        %s822 = ssub.s32 %s22, 2
        // Predicated region
        $region61: #{tpu_custom_call.1} parent=59 // pred_check
          %p823 = pneg %p140
        $region62: #{tpu_custom_call.1} parent=59 // pred_check_branch
          %825 = sbr.rel (%p823) target = $region64
        $region63: #{tpu_custom_call.1} parent=59 // pred_region
          %s826 = sand.u32 %s125, 1
          %s827 = scalar_lea.sflag [#allocation4], %s826
          %s828 = sand.u32 %s125, 1
          %s829 = smul.addr %s828, 128
          %s830 = scalar_lea.vmem [#allocation8], %s829
          %831 = dma.done %s827, 2048
        $region64: #{tpu_custom_call.1} parent=59 // pred_fallthru
          _
        // Predicated region
        $region65: #{tpu_custom_call.1} parent=59 // pred_check
          %p832 = pneg %p166
        $region66: #{tpu_custom_call.1} parent=59 // pred_check_branch
          %834 = sbr.rel (%p832) target = $region68
        $region67: #{tpu_custom_call.1} parent=59 // pred_region
          %s835 = sand.u32 %s151, 1
          %s836 = scalar_lea.sflag [#allocation10], %s835
          %s837 = sand.u32 %s151, 1
          %s838 = smul.addr %s837, 64
          %s839 = scalar_lea.vmem [#allocation9], %s838
          %840 = dma.done %s836, 1024
        $region68: #{tpu_custom_call.1} parent=59 // pred_fallthru
          _
      $region60: #{tpu_custom_call.1} parent=5 // pred_fallthru
        _
    $region6: #{tpu_custom_call.1} parent=1 // loop_footer
      %s26 = sadd.s32 1, %s22
    $region7: #{tpu_custom_call.1} parent=1 // loop_footer_branch
      %21 = sbr.rel target = $region3
    $region8: #{tpu_custom_call.1} parent=1 // loop_exit
      _
    %841 = vsyncpa [#allocation3], 1
    %s842 = scalar_lea.sflag [#allocation3], 1
    %843 = vsyncpa %s842, 1
    %844 = vsyncpa [#allocation6], 1
    %845 = vsyncpa [#allocation4], 1
    %s846 = scalar_lea.sflag [#allocation4], 1
    %847 = vsyncpa %s846, 1
    %848 = vsyncpa [#allocation10], 1
    %s849 = scalar_lea.sflag [#allocation10], 1
    %850 = vsyncpa %s849, 1

</llo_original>
